<compile_context>
chip_gen: v7x
topology: tpu7x:2x2x1
jax: 0.10.0
libtpu: 0.0.40
codegen_flags: <defaults>
</compile_context>

<pallas_src>
import functools

import jax
import jax.numpy as jnp
from jax.experimental import pallas as pl
from jax.experimental.pallas import tpu as pltpu


def _round_up(n: int, m: int) -> int:
    return ((n + m - 1) // m) * m


def _cdiv(a: int, b: int) -> int:
    return -(-a // b)


# ---------------------------------------------------------------------------
# Capability probes for pipeline_mode=pl.Buffered(n); fall back safely if the
# build rejects it or produces wrong data.
# ---------------------------------------------------------------------------
def _probe_copy_kernel(x_ref, o_ref):
    o_ref[...] = x_ref[...]


@functools.lru_cache(maxsize=None)
def _buffered_supported(buffer_count: int, constant_index: bool) -> bool:
    if not hasattr(pl, "Buffered"):
        return False
    try:
        idx = (lambda i: (0, 0)) if constant_index else (lambda i: (i, 0))
        f = pl.pallas_call(
            _probe_copy_kernel,
            out_shape=jax.ShapeDtypeStruct((32, 128), jnp.float32),
            grid=(4,),
            in_specs=[pl.BlockSpec((8, 128), idx,
                                   pipeline_mode=pl.Buffered(buffer_count))],
            out_specs=pl.BlockSpec((8, 128), lambda i: (i, 0)),
        )
        x = jnp.arange(32 * 128, dtype=jnp.float32).reshape(32, 128)
        y = jax.block_until_ready(f(x))
        ref = jnp.tile(x[:8], (4, 1)) if constant_index else x
        return bool(jnp.array_equal(y, ref))
    except Exception:
        return False


def _resident_spec(shape):
    """BlockSpec for a block whose index never changes (kept resident in VMEM)."""
    index_map = lambda *_: (0,) * len(shape)
    if _buffered_supported(1, True):
        # Constant block index -> one buffer is enough; halves resident VMEM cost.
        return pl.BlockSpec(shape, index_map, pipeline_mode=pl.Buffered(1))
    return pl.BlockSpec(shape, index_map)


def _vmem_limit_bytes() -> int:
    cap = 128 << 20
    try:
        cap = int(getattr(pltpu.get_tpu_info(), "vmem_capacity_bytes", cap) or cap)
    except Exception:
        pass
    # Headroom for Mosaic's own scratch / DMA machinery:
    # ~54 MiB on v7x (64 MiB/TC physical), ~108 MiB on v5e/v6e (128 MiB physical).
    return min(int(cap * 0.85), 112 << 20)


# ---------------------------------------------------------------------------
# Parameter folding (always in f32, then cast): bn(x @ W + b) = x @ (W * s) + t
#   with s = g * rsqrt(rv + eps), t = (b - rm) * s + beta.
# ---------------------------------------------------------------------------
def _fold_params(params, compute_dtype):
    f32 = jnp.float32
    eps = 1e-5
    s1 = params["bn1_g"].astype(f32) * jax.lax.rsqrt(params["bn1_rv"].astype(f32) + eps)
    t1 = (params["fc1_b"].astype(f32) - params["bn1_rm"].astype(f32)) * s1 \
        + params["bn1_b"].astype(f32)
    s2 = params["bn2_g"].astype(f32) * jax.lax.rsqrt(params["bn2_rv"].astype(f32) + eps)
    t2 = (params["fc2_b"].astype(f32) - params["bn2_rm"].astype(f32)) * s2 \
        + params["bn2_b"].astype(f32)
    w1 = (params["fc1_w"].astype(f32) * s1[None, :]).astype(compute_dtype)
    w2 = (params["fc2_w"].astype(f32) * s2[None, :]).astype(compute_dtype)
    w3 = params["fc3_w"].astype(compute_dtype)
    b3 = params["fc3_b"].astype(f32)
    return w1, t1, w2, t2, w3, b3


# ---------------------------------------------------------------------------
# Tile selection
# ---------------------------------------------------------------------------
def _pick_out_tile(O: int, out_tile: int):
    """Largest multiple-of-128 tile <= out_tile that divides round_up(O, 128).

    When O % 128 == 0 (real module: 77*768), o_pad == O and no column padding or
    post-kernel slice is needed.  Falls back to padding only when the best divisor
    would be a degenerate 128-wide MXU tile.
    """
    o_lane = _round_up(O, 128)
    best = 128
    t = 128
    while t <= out_tile:
        if o_lane % t == 0:
            best = t
        t += 128
    if best >= 256 or out_tile <= 128:
        return best, o_lane
    tn = _round_up(out_tile, 128)
    return tn, _round_up(o_lane, tn)


def _pick_batch_tile(B: int, batch_tile: int) -> int:
    n_tiles = _cdiv(B, batch_tile)
    # Keep >= 2 batch tiles whenever B is big enough: the batch axis is the only
    # "parallel" grid axis, so a single tile would idle one v7x TensorCore.
    if B >= 32:
        n_tiles = max(n_tiles, 2)
    # Rebalance ragged B into equal-ish tiles instead of padding up to the cap
    # (avoids wasting up to ~2x of fc3 MXU work on zero rows).
    return _round_up(_cdiv(B, n_tiles), 16)


def _vmem_estimate(tb, tn, D, H1, H2, *, resident_bufs, w3_bufs, out_itemsize):
    bf = 2  # bf16 operand bytes
    return (2 * tb * D * bf                                              # x tiles (2 bufs)
            + resident_bufs * (D * H1 * bf + H1 * 4 + H1 * H2 * bf + H2 * 4)  # w1/t1/w2/t2
            + w3_bufs * (H2 * tn * bf + tn * 4)                          # w3 + bias slabs
            + 2 * tb * tn * out_itemsize                                 # output tiles (2 bufs)
            + tb * H2 * bf)                                              # cached h2 scratch


# ---------------------------------------------------------------------------
# Kernel
# ---------------------------------------------------------------------------
def _mlp_mapper_kernel(x_ref, w1_ref, t1_ref, w2_ref, t2_ref, w3_ref, b3_ref,
                       o_ref, h2_ref):
    j = pl.program_id(1)

    # h1/h2 are computed once per batch tile (j == 0) and cached in VMEM scratch;
    # the inner grid axis j only streams (H2, tn) slabs of w3 through fc3.
    @pl.when(j == 0)
    def _():
        # fc1 (+ folded bn1) + relu.  Dropout == identity in eval mode.
        h1 = jnp.dot(x_ref[...], w1_ref[...], preferred_element_type=jnp.float32)
        h1 = jnp.maximum(h1 + t1_ref[...], 0.0).astype(w2_ref.dtype)
        # fc2 (+ folded bn2) + relu.
        h2 = jnp.dot(h1, w2_ref[...], preferred_element_type=jnp.float32)
        h2_ref[...] = jnp.maximum(h2 + t2_ref[...], 0.0).astype(h2_ref.dtype)

    # fc3 on one output slab (MXU, bf16 operands, f32 accumulation).
    out = jnp.dot(h2_ref[...], w3_ref[...], preferred_element_type=jnp.float32)
    o_ref[...] = (out + b3_ref[...]).astype(o_ref.dtype)


def mlp_mapper_forward(x, params, *, seq, dim, batch_tile=768, out_tile=896,
                       compute_dtype=jnp.bfloat16, out_dtype=None):
    """Fused MLPMapper forward.  Returns (B, seq, dim); eval-mode semantics."""
    B, D = x.shape
    out_dtype = x.dtype if out_dtype is None else out_dtype
    w1, t1, w2, t2, w3, b3 = _fold_params(params, compute_dtype)
    H1 = w1.shape[1]
    H2 = w2.shape[1]
    O = w3.shape[1]
    assert O == seq * dim, (O, seq, dim)

    tn, o_pad = _pick_out_tile(O, out_tile)
    tb = _pick_batch_tile(B, batch_tile)

    # Explicit VMEM accounting against the chip budget (critical on v7x's 64 MiB/TC).
    resident_bufs = 1 if _buffered_supported(1, True) else 2
    w3_bufs = 3 if _buffered_supported(3, False) else 2
    budget = int(_vmem_limit_bytes() * 0.85)
    out_itemsize = jnp.dtype(out_dtype).itemsize
    while _vmem_estimate(tb, tn, D, H1, H2, resident_bufs=resident_bufs,
                         w3_bufs=w3_bufs, out_itemsize=out_itemsize) > budget:
        if w3_bufs > 2:
            w3_bufs = 2
        elif tb > 64:
            tb = _round_up(_cdiv(tb, 2), 16)
        elif tn > 128:
            tn, o_pad = _pick_out_tile(O, tn - 128)
        else:
            break

    # Column padding only if no decent divisor of round_up(O,128) exists (not the real module).
    if o_pad != O:
        w3 = jnp.pad(w3, ((0, 0), (0, o_pad - O)))
        b3 = jnp.pad(b3, ((0, o_pad - O),))

    b_pad = _round_up(B, tb)
    xk = x.astype(compute_dtype)
    if b_pad != B:
        xk = jnp.pad(xk, ((0, b_pad - B), (0, 0)))

    t1r = t1.reshape(1, H1)
    t2r = t2.reshape(1, H2)
    b3r = b3.reshape(1, o_pad)

    grid = (b_pad // tb, o_pad // tn)

    if w3_bufs == 3:
        w3_spec = pl.BlockSpec((H2, tn), lambda i, j: (0, j), pipeline_mode=pl.Buffered(3))
    else:
        w3_spec = pl.BlockSpec((H2, tn), lambda i, j: (0, j))

    out_flat = pl.pallas_call(
        _mlp_mapper_kernel,
        out_shape=jax.ShapeDtypeStruct((b_pad, o_pad), out_dtype),
        grid_spec=pltpu.PrefetchScalarGridSpec(
            num_scalar_prefetch=0,
            grid=grid,
            in_specs=[
                pl.BlockSpec((tb, D), lambda i, j: (i, 0)),   # x batch tile (streamed)
                _resident_spec((D, H1)),                       # w1 * s1  (resident)
                _resident_spec((1, H1)),                       # bn1/bias shift
                _resident_spec((H1, H2)),                      # w2 * s2  (resident)
                _resident_spec((1, H2)),                       # bn2/bias shift
                w3_spec,                                       # w3 slab  (streamed)
                pl.BlockSpec((1, tn), lambda i, j: (0, j)),    # fc3 bias slab
            ],
            out_specs=pl.BlockSpec((tb, tn), lambda i, j: (i, j)),
            scratch_shapes=[pltpu.VMEM((tb, H2), compute_dtype)],   # cached h2
        ),
        compiler_params=pltpu.CompilerParams(
            dimension_semantics=("parallel", "arbitrary"),
            vmem_limit_bytes=_vmem_limit_bytes(),
        ),
    )(xk, w1, t1r, w2, t2r, w3, b3r)

    # Common case (O % 128 == 0, tn divides O, B % tb == 0): no slice, free reshape.
    if b_pad == B and o_pad == O:
        return out_flat.reshape(B, seq, dim)
    return out_flat[:B, :O].reshape(B, seq, dim)


# ---------------------------------------------------------------------------
# References
# ---------------------------------------------------------------------------
def _reference_forward(x, params, *, seq, dim):
    """Pure-JAX f32 reference (eval-mode PyTorch semantics)."""
    eps = 1e-5
    h = x @ params["fc1_w"] + params["fc1_b"]
    h = (h - params["bn1_rm"]) / jnp.sqrt(params["bn1_rv"] + eps) * params["bn1_g"] + params["bn1_b"]
    h = jnp.maximum(h, 0.0)
    h = h @ params["fc2_w"] + params["fc2_b"]
    h = (h - params["bn2_rm"]) / jnp.sqrt(params["bn2_rv"] + eps) * params["bn2_g"] + params["bn2_b"]
    h = jnp.maximum(h, 0.0)
    h = h @ params["fc3_w"] + params["fc3_b"]
    return h.reshape(x.shape[0], seq, dim)


def _matched_reference(x, params, *, seq, dim, compute_dtype=jnp.bfloat16):
    """Reference that mirrors the kernel's mixed precision (bf16 operands, f32 accum)."""
    f32 = jnp.float32
    w1, t1, w2, t2, w3, b3 = _fold_params(params, compute_dtype)
    xq = x.astype(compute_dtype).astype(f32)
    h1 = jnp.maximum(xq @ w1.astype(f32) + t1, 0.0).astype(compute_dtype).astype(f32)
    h2 = jnp.maximum(h1 @ w2.astype(f32) + t2, 0.0).astype(compute_dtype).astype(f32)
    out = h2 @ w3.astype(f32) + b3
    return out.reshape(x.shape[0], seq, dim).astype(x.dtype)


def make_params(key, input_dim, h1, h2, output_dim, dtype=jnp.float32):
    ks = jax.random.split(key, 10)

    def linear(kw, kb, fan_in, fan_out):
        bound = 1.0 / jnp.sqrt(fan_in)
        w = jax.random.uniform(kw, (fan_in, fan_out), dtype, -bound, bound)
        b = jax.random.uniform(kb, (fan_out,), dtype, -bound, bound)
        return w, b

    fc1_w, fc1_b = linear(ks[0], ks[1], input_dim, h1)
    fc2_w, fc2_b = linear(ks[2], ks[3], h1, h2)
    fc3_w, fc3_b = linear(ks[4], ks[5], h2, output_dim)

    return dict(
        fc1_w=fc1_w, fc1_b=fc1_b,
        bn1_g=jnp.ones((h1,), dtype),
        bn1_b=jnp.zeros((h1,), dtype),
        bn1_rm=0.1 * jax.random.normal(ks[6], (h1,), dtype),
        bn1_rv=jnp.abs(jax.random.normal(ks[7], (h1,), dtype)) + 0.5,
        fc2_w=fc2_w, fc2_b=fc2_b,
        bn2_g=jnp.ones((h2,), dtype),
        bn2_b=jnp.zeros((h2,), dtype),
        bn2_rm=0.1 * jax.random.normal(ks[8], (h2,), dtype),
        bn2_rv=jnp.abs(jax.random.normal(ks[9], (h2,), dtype)) + 0.5,
        fc3_w=fc3_w, fc3_b=fc3_b,
    )


if __name__ == "__main__":
    # Small shapes consistent with the module structure
    # (input_dim -> h1 -> h2 -> seq*dim, reshaped to (B, seq, dim)), scaled down:
    #   input_dim=64, hidden 128/256, output 8*128=1024, ragged batch of 24.
    B, INPUT_DIM, H1, H2 = 24, 64, 128, 256
    SEQ, DIM = 8, 128
    OUTPUT_DIM = SEQ * DIM

    key = jax.random.PRNGKey(0)
    k_params, k_x = jax.random.split(key)
    params = make_params(k_params, INPUT_DIM, H1, H2, OUTPUT_DIM)
    x = jax.random.normal(k_x, (B, INPUT_DIM), jnp.float32)

    # Warm the capability probes outside any jit trace.
    _buffered_supported(1, True)
    _buffered_supported(3, False)

    # Small tile caps here so the test still exercises batch pipelining (2 batch tiles)
    # and fc3 output streaming (4 output tiles); defaults (768 / 896) target real sizes.
    fwd = jax.jit(functools.partial(mlp_mapper_forward, seq=SEQ, dim=DIM,
                                    batch_tile=16, out_tile=256))
    out = fwd(x, params)
    jax.block_until_ready(out)
    assert out.shape == (B, SEQ, DIM), out.shape

    # Tight check vs. a reference that mimics the kernel's bf16 operand rounding.
    ref_matched = _matched_reference(x, params, seq=SEQ, dim=DIM)
    assert jnp.allclose(out, ref_matched, atol=5e-3, rtol=5e-3), \
        "mismatch vs precision-matched reference"

    # Looser sanity check vs. pure-f32 eval-mode PyTorch semantics.
    ref_f32 = _reference_forward(x, params, seq=SEQ, dim=DIM)
    assert jnp.allclose(out, ref_f32, atol=5e-2, rtol=5e-2), \
        "mismatch vs f32 reference"

    print("KERNEL_OK")
</pallas_src>

<mosaic_0001>
module attributes {stable_mosaic.version = 11 : i64} {
  func.func @_probe_copy_kernel(%arg0: i32, %arg1: memref<8x128xf32, #tpu.memory_space<vmem>>, %arg2: memref<8x128xf32, #tpu.memory_space<vmem>>) attributes {dimension_semantics = [#tpu.dimension_semantics<arbitrary>], iteration_bounds = array<i64: 4>, scalar_prefetch = 0 : i64, scratch_operands = 0 : i64, tpu.core_type = #tpu.core_type<tc>, window_params = [{pipeline_mode = #tpu.pipeline_mode<synchronous>, transform_indices = @transform_0, window_bounds = array<i64: 8, 128>}, {transform_indices = @transform_1, window_bounds = array<i64: 8, 128>}]} {
    %c0 = arith.constant 0 : index
    %c0_0 = arith.constant 0 : index
    %0 = vector.load %arg1[%c0, %c0_0] : memref<8x128xf32, #tpu.memory_space<vmem>>, vector<8x128xf32>
    %c0_1 = arith.constant 0 : index
    %c0_2 = arith.constant 0 : index
    %1 = vector.load %arg2[%c0_1, %c0_2] : memref<8x128xf32, #tpu.memory_space<vmem>>, vector<8x128xf32>
    tpu.vector_store %arg2[%c0_1, %c0_2], %0 {strides = array<i32>} : memref<8x128xf32, #tpu.memory_space<vmem>>, vector<8x128xf32>,
    return
  }
  func.func @transform_0(%arg0: i32) -> (i32, i32) {
    %c0_i32 = arith.constant 0 : i32
    %c0_i32_0 = arith.constant 0 : i32
    %c0_i32_1 = arith.constant 0 : i32
    return %c0_i32, %c0_i32_0 : i32, i32
  }
  func.func @transform_1(%arg0: i32) -> (i32, i32) {
    %c0_i32 = arith.constant 0 : i32
    %c0_i32_0 = arith.constant 0 : i32
    return %arg0, %c0_i32 : i32, i32
  }
}

module attributes {stable_mosaic.version = 11 : i64} {
  func.func @_mlp_mapper_kernel(%arg0: i32, %arg1: i32, %arg2: memref<16x64xbf16, #tpu.memory_space<vmem>>, %arg3: memref<64x128xbf16, #tpu.memory_space<vmem>>, %arg4: memref<1x128xf32, #tpu.memory_space<vmem>>, %arg5: memref<128x256xbf16, #tpu.memory_space<vmem>>, %arg6: memref<1x256xf32, #tpu.memory_space<vmem>>, %arg7: memref<256x256xbf16, #tpu.memory_space<vmem>>, %arg8: memref<1x256xf32, #tpu.memory_space<vmem>>, %arg9: memref<16x256xf32, #tpu.memory_space<vmem>>, %arg10: memref<16x256xbf16, #tpu.memory_space<vmem>>) attributes {dimension_semantics = [#tpu.dimension_semantics<parallel>, #tpu.dimension_semantics<arbitrary>], iteration_bounds = array<i64: 2, 4>, scalar_prefetch = 0 : i64, scratch_operands = 1 : i64, tpu.core_type = #tpu.core_type<tc>, window_params = [{transform_indices = @transform_0, window_bounds = array<i64: 16, 64>}, {pipeline_mode = #tpu.pipeline_mode<synchronous>, transform_indices = @transform_1, window_bounds = array<i64: 64, 128>}, {pipeline_mode = #tpu.pipeline_mode<synchronous>, transform_indices = @transform_2, window_bounds = array<i64: 1, 128>}, {pipeline_mode = #tpu.pipeline_mode<synchronous>, transform_indices = @transform_3, window_bounds = array<i64: 128, 256>}, {pipeline_mode = #tpu.pipeline_mode<synchronous>, transform_indices = @transform_4, window_bounds = array<i64: 1, 256>}, {transform_indices = @transform_5, window_bounds = array<i64: 256, 256>}, {transform_indices = @transform_6, window_bounds = array<i64: 1, 256>}, {transform_indices = @transform_7, window_bounds = array<i64: 16, 256>}]} {
    %c0_i32 = arith.constant 0 : i32
    %0 = arith.cmpi eq, %arg1, %c0_i32 : i32
    %1 = arith.extui %0 : i1 to i32
    %c0_i32_0 = arith.constant 0 : i32
    %2 = arith.cmpi ne, %1, %c0_i32_0 : i32
    scf.if %2 {
      %c0_8 = arith.constant 0 : index
      %c0_9 = arith.constant 0 : index
      %10 = vector.load %arg2[%c0_8, %c0_9] : memref<16x64xbf16, #tpu.memory_space<vmem>>, vector<16x64xbf16>
      %c0_10 = arith.constant 0 : index
      %c0_11 = arith.constant 0 : index
      %11 = vector.load %arg3[%c0_10, %c0_11] : memref<64x128xbf16, #tpu.memory_space<vmem>>, vector<64x128xbf16>
      %cst_12 = arith.constant dense<0.000000e+00> : vector<16x128xf32>
      %12 = tpu.matmul %10, %11, %cst_12 {dimension_numbers = #tpu.dot_dimension_numbers<[1], [0], [0], [1], [0, 0, 1, 1], [], []>} : vector<16x64xbf16>, vector<64x128xbf16>, vector<16x128xf32> -> vector<16x128xf32>
      %c0_13 = arith.constant 0 : index
      %c0_14 = arith.constant 0 : index
      %13 = vector.load %arg4[%c0_13, %c0_14] : memref<1x128xf32, #tpu.memory_space<vmem>>, vector<1x128xf32>
      %14 = vector.broadcast %13 : vector<1x128xf32> to vector<16x128xf32>
      %15 = arith.addf %12, %14 : vector<16x128xf32>
      %cst_15 = arith.constant 0.000000e+00 : f32
      %16 = vector.broadcast %cst_15 : f32 to vector<16x128xf32>
      %17 = arith.maximumf %15, %16 : vector<16x128xf32>
      %18 = arith.truncf %17 : vector<16x128xf32> to vector<16x128xbf16>
      %c0_16 = arith.constant 0 : index
      %c0_17 = arith.constant 0 : index
      %19 = vector.load %arg5[%c0_16, %c0_17] : memref<128x256xbf16, #tpu.memory_space<vmem>>, vector<128x256xbf16>
      %cst_18 = arith.constant dense<0.000000e+00> : vector<16x256xf32>
      %20 = tpu.matmul %18, %19, %cst_18 {dimension_numbers = #tpu.dot_dimension_numbers<[1], [0], [0], [1], [0, 0, 1, 1], [], []>} : vector<16x128xbf16>, vector<128x256xbf16>, vector<16x256xf32> -> vector<16x256xf32>
      %c0_19 = arith.constant 0 : index
      %c0_20 = arith.constant 0 : index
      %21 = vector.load %arg6[%c0_19, %c0_20] : memref<1x256xf32, #tpu.memory_space<vmem>>, vector<1x256xf32>
      %22 = vector.broadcast %21 : vector<1x256xf32> to vector<16x256xf32>
      %23 = arith.addf %20, %22 : vector<16x256xf32>
      %cst_21 = arith.constant 0.000000e+00 : f32
      %24 = vector.broadcast %cst_21 : f32 to vector<16x256xf32>
      %25 = arith.maximumf %23, %24 : vector<16x256xf32>
      %26 = arith.truncf %25 : vector<16x256xf32> to vector<16x256xbf16>
      %c0_22 = arith.constant 0 : index
      %c0_23 = arith.constant 0 : index
      %27 = vector.load %arg10[%c0_22, %c0_23] : memref<16x256xbf16, #tpu.memory_space<vmem>>, vector<16x256xbf16>
      tpu.vector_store %arg10[%c0_22, %c0_23], %26 {strides = array<i32>} : memref<16x256xbf16, #tpu.memory_space<vmem>>, vector<16x256xbf16>,
    } else {
    }
    %c0 = arith.constant 0 : index
    %c0_1 = arith.constant 0 : index
    %3 = vector.load %arg10[%c0, %c0_1] : memref<16x256xbf16, #tpu.memory_space<vmem>>, vector<16x256xbf16>
    %c0_2 = arith.constant 0 : index
    %c0_3 = arith.constant 0 : index
    %4 = vector.load %arg7[%c0_2, %c0_3] : memref<256x256xbf16, #tpu.memory_space<vmem>>, vector<256x256xbf16>
    %cst = arith.constant dense<0.000000e+00> : vector<16x256xf32>
    %5 = tpu.matmul %3, %4, %cst {dimension_numbers = #tpu.dot_dimension_numbers<[1], [0], [0], [1], [0, 0, 1, 1], [], []>} : vector<16x256xbf16>, vector<256x256xbf16>, vector<16x256xf32> -> vector<16x256xf32>
    %c0_4 = arith.constant 0 : index
    %c0_5 = arith.constant 0 : index
    %6 = vector.load %arg8[%c0_4, %c0_5] : memref<1x256xf32, #tpu.memory_space<vmem>>, vector<1x256xf32>
    %7 = vector.broadcast %6 : vector<1x256xf32> to vector<16x256xf32>
    %8 = arith.addf %5, %7 : vector<16x256xf32>
    %c0_6 = arith.constant 0 : index
    %c0_7 = arith.constant 0 : index
    %9 = vector.load %arg9[%c0_6, %c0_7] : memref<16x256xf32, #tpu.memory_space<vmem>>, vector<16x256xf32>
    tpu.vector_store %arg9[%c0_6, %c0_7], %8 {strides = array<i32>} : memref<16x256xf32, #tpu.memory_space<vmem>>, vector<16x256xf32>,
    return
  }
  func.func @transform_0(%arg0: i32, %arg1: i32) -> (i32, i32) {
    %c0_i32 = arith.constant 0 : i32
    %c0_i32_0 = arith.constant 0 : i32
    return %arg0, %c0_i32 : i32, i32
  }
  func.func @transform_1(%arg0: i32, %arg1: i32) -> (i32, i32) {
    %c0_i32 = arith.constant 0 : i32
    %c0_i32_0 = arith.constant 0 : i32
    %c0_i32_1 = arith.constant 0 : i32
    return %c0_i32, %c0_i32_0 : i32, i32
  }
  func.func @transform_2(%arg0: i32, %arg1: i32) -> (i32, i32) {
    %c0_i32 = arith.constant 0 : i32
    %c0_i32_0 = arith.constant 0 : i32
    %c0_i32_1 = arith.constant 0 : i32
    return %c0_i32, %c0_i32_0 : i32, i32
  }
  func.func @transform_3(%arg0: i32, %arg1: i32) -> (i32, i32) {
    %c0_i32 = arith.constant 0 : i32
    %c0_i32_0 = arith.constant 0 : i32
    %c0_i32_1 = arith.constant 0 : i32
    return %c0_i32, %c0_i32_0 : i32, i32
  }
  func.func @transform_4(%arg0: i32, %arg1: i32) -> (i32, i32) {
    %c0_i32 = arith.constant 0 : i32
    %c0_i32_0 = arith.constant 0 : i32
    %c0_i32_1 = arith.constant 0 : i32
    return %c0_i32, %c0_i32_0 : i32, i32
  }
  func.func @transform_5(%arg0: i32, %arg1: i32) -> (i32, i32) {
    %c0_i32 = arith.constant 0 : i32
    %c0_i32_0 = arith.constant 0 : i32
    return %c0_i32, %arg1 : i32, i32
  }
  func.func @transform_6(%arg0: i32, %arg1: i32) -> (i32, i32) {
    %c0_i32 = arith.constant 0 : i32
    %c0_i32_0 = arith.constant 0 : i32
    return %c0_i32, %arg1 : i32, i32
  }
  func.func @transform_7(%arg0: i32, %arg1: i32) -> (i32, i32) {
    %c0_i32 = arith.constant 0 : i32
    return %arg0, %arg1 : i32, i32
  }
}

</mosaic_0001>

<llo_original>
// kernel: tpu_custom_call.1
$region0: #{tpu_custom_call.1}
  #allocation0 [shape = 'u32[]', space=smem, size = 0x4, offset = 0x4, fixed_abs, tag = 'smem constant byte address 0x4 - core index']
  #allocation1 [shape = 'u32[144,128]{1,0:T(1,128)}', space=vmem, size = 0x12000, scoped, tag = 'internal scratch']
  %s0 = inlined_call_operand.hbm [shape: f32[32,128], index: 0, kind: input, shape index: {}]
  %s1 = inlined_call_operand.hbm [shape: f32[32,128], index: 1, kind: output, shape index: {}]
  %s2 = sld [smem:[#allocation0]]
  $region41: #{tpu_custom_call.1} parent=0
    _
  %s4 = ssub.s32 1, %s2
  %s5 = scalar_select 0, %s4, %s2
  $region1: #{tpu_custom_call.1} parent=0
    #allocation2 [shape = 'u8[4096]{0}', space=vmem, size = 0x1000, scoped, tag = 'input window, operand 0, single buffered']
    #allocation3 [shape = 's32[2]{0}', space=sflag, size = 0x8, scoped, tag = 'scoped memory for tpu_custom_call.1']
    #allocation4 [shape = 's32[2]{0}', space=sflag, size = 0x8, scoped, tag = 'scoped memory for tpu_custom_call.1']
    #allocation5 [shape = 'u8[8192]{0}', space=vmem, size = 0x2000, scoped, tag = 'output window, operand 0']
    %6 = vsyncpa [#allocation3], 0
    %7 = vsyncpa [#allocation4], 0
    %s8 = scalar_lea.sflag [#allocation4], 1
    %9 = vsyncpa %s8, 0
    loop: start=0, step=1, limit=6
    $region2: #{tpu_custom_call.1} parent=1 // loop_pre_header
      _
    $region3: #{tpu_custom_call.1} parent=1 // loop_header
      %s11 = sphi 0, %s15
      %p12 = scmp.ge.s32.totalorder %s11, 6
      %s19 = sphi 0, %s19
      %s21 = sphi 0, %s19
      %s22 = sphi 0, %s21
      %s36 = sphi 0, %s22
      %s42 = sphi 0, %s44
      %s45 = sphi 0, %s42
      %s46 = sphi 0, %s45
      %s62 = sphi 0, %s46
    $region4: #{tpu_custom_call.1} parent=1 // loop_header_branch
      %14 = sbr.rel (%p12) target = $region8
    $region5: #{tpu_custom_call.1} parent=1 // loop_body
      %s16 = ssub.s32 %s11, 1
      %s17 = ssub.s32 %s11, 2
      %s18 = sadd.s32 %s11, 1
      %s20 = sadd.s32 %s19, 1
      %p23 = scmp.eq.s32.totalorder %s11, 3
      %p24 = scmp.ne.s32.totalorder %s19, %s21
      %p25 = scmp.eq.s32.totalorder %s11, 0
      %p26 = por %p24, %p25
      %p27 = scmp.ne.s32.totalorder %s19, %s21
      %p28 = scmp.eq.s32.totalorder %s16, 3
      %p29 = por %p27, %p28
      %p30 = scmp.ne.s32.totalorder %s21, %s22
      %p31 = scmp.eq.s32.totalorder %s16, 0
      %p32 = por %p30, %p31
      %p33 = scmp.ne.s32.totalorder %s21, %s22
      %p34 = scmp.eq.s32.totalorder %s17, 3
      %p35 = por %p33, %p34
      %p37 = scmp.ne.s32.totalorder %s22, %s36
      %p38 = scmp.eq.s32.totalorder %s17, 0
      %p39 = por %p37, %p38
      %s40 = ssub.s32 %s11, %s18
      %p41 = scmp.eq.s32.totalorder %s40, 0
      %s43 = sadd.s32 %s42, 1
      %s44 = scalar_select %p41, %s42, %s43
      %p47 = pneg %p41
      %p48 = scmp.eq.s32.totalorder %s11, 3
      %p49 = por %p47, %p48
      %p50 = scmp.ne.s32.totalorder %s42, %s45
      %p51 = scmp.eq.s32.totalorder %s11, 0
      %p52 = por %p50, %p51
      %p53 = scmp.ne.s32.totalorder %s42, %s45
      %p54 = scmp.eq.s32.totalorder %s16, 3
      %p55 = por %p53, %p54
      %p56 = scmp.ne.s32.totalorder %s45, %s46
      %p57 = scmp.eq.s32.totalorder %s16, 0
      %p58 = por %p56, %p57
      %p59 = scmp.ne.s32.totalorder %s45, %s46
      %p60 = scmp.eq.s32.totalorder %s17, 3
      %p61 = por %p59, %p60
      %p63 = scmp.ne.s32.totalorder %s46, %s62
      %p64 = scmp.eq.s32.totalorder %s17, 0
      %p65 = por %p63, %p64
      %p66 = scmp.le.s32.totalorder 1, %s11
      %p67 = scmp.lt.s32.totalorder %s11, 5
      %p68 = pnand %p66, %p67
      %p69 = pneg %p68
      // Predicated region
      $region9: #{tpu_custom_call.1} parent=5 // pred_check
        _
      $region10: #{tpu_custom_call.1} parent=5 // pred_check_branch
        %71 = sbr.rel (%p68) target = $region12
      $region11: #{tpu_custom_call.1} parent=5 // pred_region
        %s72 = ssub.s32 %s11, 1
        // Predicated region
        $region13: #{tpu_custom_call.1} parent=11 // pred_check
          %p73 = pneg %p32
        $region14: #{tpu_custom_call.1} parent=11 // pred_check_branch
          %75 = sbr.rel (%p73) target = $region16
        $region15: #{tpu_custom_call.1} parent=11 // pred_region
          %s77 = ssub.s32 128, 128
          %78 = vsyncadd [#allocation3], %s77
          %s80 = sshll.u32 [#allocation2], 4
          %s81 = int_to_ptr.vmem [resolvable:$true] %s80
          %83 = dma.hbm_to_vmem [thread:$0]  %s0, 128, %s81, [#allocation3]
        $region16: #{tpu_custom_call.1} parent=11 // pred_fallthru
          _
      $region12: #{tpu_custom_call.1} parent=5 // pred_fallthru
        _
      %p84 = scmp.lt.s32.totalorder %s11, 4
      // Predicated region
      $region17: #{tpu_custom_call.1} parent=5 // pred_check
        %p85 = pneg %p84
      $region18: #{tpu_custom_call.1} parent=5 // pred_check_branch
        %87 = sbr.rel (%p85) target = $region20
      $region19: #{tpu_custom_call.1} parent=5 // pred_region
        _
      $region20: #{tpu_custom_call.1} parent=5 // pred_fallthru
        _
      %p88 = scmp.le.s32.totalorder 1, %s11
      %p89 = scmp.lt.s32.totalorder %s11, 5
      %p90 = pnand %p88, %p89
      %p91 = pneg %p90
      // Predicated region
      $region21: #{tpu_custom_call.1} parent=5 // pred_check
        _
      $region22: #{tpu_custom_call.1} parent=5 // pred_check_branch
        %93 = sbr.rel (%p90) target = $region24
      $region23: #{tpu_custom_call.1} parent=5 // pred_region
        %s94 = ssub.s32 %s11, 1
        // Predicated region
        $region25: #{tpu_custom_call.1} parent=23 // pred_check
          %p95 = pneg %p32
        $region26: #{tpu_custom_call.1} parent=23 // pred_check_branch
          %97 = sbr.rel (%p95) target = $region28
        $region27: #{tpu_custom_call.1} parent=23 // pred_region
          %98 = dma.done [#allocation3], 128
        $region28: #{tpu_custom_call.1} parent=23 // pred_fallthru
          _
        %p99 = pneg %p32
        %p100 = pneg %p29
        %p101 = pneg %p58
        %p102 = pneg %p55
        %s103 = sand.u32 %s45, 1
        %s104 = scalar_lea.sflag [#allocation4], %s103
        %s105 = sand.u32 %s45, 1
        %s106 = smul.addr %s105, 8
        %s107 = scalar_lea.vmem [#allocation5], %s106
        %v108 = vld [vmem:[#allocation2] sm:$0xff]
        %109 = vst [vmem:[%s107] sm:$0xff] %v108
        %s110 = sand.u32 %s45, 1
        %s111 = scalar_lea.sflag [#allocation4], %s110
        %s112 = sand.u32 %s45, 1
        %s113 = smul.addr %s112, 8
        %s114 = scalar_lea.vmem [#allocation5], %s113
        // Predicated region
        $region29: #{tpu_custom_call.1} parent=23 // pred_check
          %p115 = pneg %p55
        $region30: #{tpu_custom_call.1} parent=23 // pred_check_branch
          %117 = sbr.rel (%p115) target = $region32
        $region31: #{tpu_custom_call.1} parent=23 // pred_region
          %s119 = ssub.s32 128, 128
          %120 = vsyncadd %s111, %s119
          %s121 = smul.addr %s16, 128
          %s122 = scalar_lea.hbm %s1, %s121
          %s124 = sshll.u32 %s114, 4
          %s125 = int_to_ptr.vmem [resolvable:$true] %s124
          %127 = dma.vmem_to_hbm [thread:$0]  %s125, 128, %s122, %s111
        $region32: #{tpu_custom_call.1} parent=23 // pred_fallthru
          _
      $region24: #{tpu_custom_call.1} parent=5 // pred_fallthru
        _
      %p128 = scmp.le.s32.totalorder 2, %s11
      // Predicated region
      $region33: #{tpu_custom_call.1} parent=5 // pred_check
        %p129 = pneg %p128
      $region34: #{tpu_custom_call.1} parent=5 // pred_check_branch
        %131 = sbr.rel (%p129) target = $region36
      $region35: #{tpu_custom_call.1} parent=5 // pred_region
        %s132 = ssub.s32 %s11, 2
        // Predicated region
        $region37: #{tpu_custom_call.1} parent=35 // pred_check
          %p133 = pneg %p61
        $region38: #{tpu_custom_call.1} parent=35 // pred_check_branch
          %135 = sbr.rel (%p133) target = $region40
        $region39: #{tpu_custom_call.1} parent=35 // pred_region
          %s136 = sand.u32 %s46, 1
          %s137 = scalar_lea.sflag [#allocation4], %s136
          %s138 = sand.u32 %s46, 1
          %s139 = smul.addr %s138, 8
          %s140 = scalar_lea.vmem [#allocation5], %s139
          %141 = dma.done %s137, 128
        $region40: #{tpu_custom_call.1} parent=35 // pred_fallthru
          _
      $region36: #{tpu_custom_call.1} parent=5 // pred_fallthru
        _
    $region6: #{tpu_custom_call.1} parent=1 // loop_footer
      %s15 = sadd.s32 1, %s11
    $region7: #{tpu_custom_call.1} parent=1 // loop_footer_branch
      %10 = sbr.rel target = $region3
    $region8: #{tpu_custom_call.1} parent=1 // loop_exit
      _
    %142 = vsyncpa [#allocation3], 1
    %s143 = scalar_lea.sflag [#allocation3], 1
    %144 = vsyncpa %s143, 1
    %145 = vsyncpa [#allocation4], 1
    %s146 = scalar_lea.sflag [#allocation4], 1
    %147 = vsyncpa %s146, 1

// kernel: mlp_mapper_forward.1
$region0: #{mlp_mapper_forward.1}
  #allocation0 [shape = 'u32[]', space=smem, size = 0x4, offset = 0x4, fixed_abs, tag = 'smem constant byte address 0x4 - core index']
  #allocation1 [shape = 'u32[144,128]{1,0:T(1,128)}', space=vmem, size = 0x12000, scoped, tag = 'internal scratch']
  #allocation2 [shape = 'bf16[16,256]{1,0:T(16,128)(2,1)}', space=vmem, size = 0x2000, scoped, tag = 'scratch operand']
  %s0 = inlined_call_operand.hbm [shape: bf16[32,64], index: 0, kind: input, shape index: {}]
  %s1 = inlined_call_operand.hbm [shape: bf16[64,128], index: 1, kind: input, shape index: {}]
  %s2 = inlined_call_operand.hbm [shape: f32[1,128], index: 2, kind: input, shape index: {}]
  %s3 = inlined_call_operand.hbm [shape: bf16[128,256], index: 3, kind: input, shape index: {}]
  %s4 = inlined_call_operand.hbm [shape: f32[1,256], index: 4, kind: input, shape index: {}]
  %s5 = inlined_call_operand.hbm [shape: bf16[256,1024], index: 5, kind: input, shape index: {}]
  %s6 = inlined_call_operand.hbm [shape: f32[1,1024], index: 6, kind: input, shape index: {}]
  %s7 = inlined_call_operand.hbm [shape: f32[32,1024], index: 7, kind: output, shape index: {}]
  %s8 = sld [smem:[#allocation0]]
  $region93: #{mlp_mapper_forward.1} parent=0
    _
  %s10 = ssub.s32 1, %s8
  %s11 = scalar_select 0, %s10, %s8
  $region1: #{mlp_mapper_forward.1} parent=0
    #allocation3 [shape = 'u8[8192]{0}', space=vmem, size = 0x2000, scoped, tag = 'input window, operand 0']
    #allocation4 [shape = 's32[2]{0}', space=sflag, size = 0x8, scoped, tag = 'scoped memory for mlp_mapper_forward.1']
    #allocation5 [shape = 's32[2]{0}', space=sflag, size = 0x8, scoped, tag = 'scoped memory for mlp_mapper_forward.1']
    #allocation6 [shape = 'u8[16384]{0}', space=vmem, size = 0x4000, scoped, tag = 'input window, operand 1, single buffered']
    #allocation7 [shape = 's32[1]{0}', space=sflag, size = 0x4, scoped, tag = 'scoped memory for mlp_mapper_forward.1']
    #allocation8 [shape = 'u8[512]{0}', space=vmem, size = 0x400, scoped, tag = 'input window, operand 2, single buffered']
    #allocation9 [shape = 'u8[65536]{0}', space=vmem, size = 0x10000, scoped, tag = 'input window, operand 3, single buffered']
    #allocation10 [shape = 's32[1]{0}', space=sflag, size = 0x4, scoped, tag = 'scoped memory for mlp_mapper_forward.1']
    #allocation11 [shape = 'u8[1024]{0}', space=vmem, size = 0x400, scoped, tag = 'input window, operand 4, single buffered']
    #allocation12 [shape = 'u8[262144]{0}', space=vmem, size = 0x40000, scoped, tag = 'input window, operand 5']
    #allocation13 [shape = 's32[2]{0}', space=sflag, size = 0x8, scoped, tag = 'scoped memory for mlp_mapper_forward.1']
    #allocation14 [shape = 'u8[2048]{0}', space=vmem, size = 0x800, scoped, tag = 'input window, operand 6']
    #allocation15 [shape = 'u8[32768]{0}', space=vmem, size = 0x8000, scoped, tag = 'output window, operand 0']
    %12 = vsyncpa [#allocation4], 0
    %s13 = scalar_lea.sflag [#allocation4], 1
    %14 = vsyncpa %s13, 0
    %15 = vsyncpa [#allocation7], 0
    %16 = vsyncpa [#allocation10], 0
    %17 = vsyncpa [#allocation13], 0
    %s18 = scalar_lea.sflag [#allocation13], 1
    %19 = vsyncpa %s18, 0
    %20 = vsyncpa [#allocation5], 0
    %s21 = scalar_lea.sflag [#allocation5], 1
    %22 = vsyncpa %s21, 0
    loop: start=0, step=1, limit=10
    $region2: #{mlp_mapper_forward.1} parent=1 // loop_pre_header
      _
    $region3: #{mlp_mapper_forward.1} parent=1 // loop_header
      %s24 = sphi 0, %s28
      %p25 = scmp.ge.s32.totalorder %s24, 10
      %s31 = sphi 0, %s43
      %s32 = sphi 0, %s39
      %s33 = sphi 0, %s31
      %s34 = sphi 0, %s32
      %s35 = sphi 0, %s33
      %s36 = sphi 0, %s34
      %s46 = sphi 0, %s48
      %s49 = sphi 0, %s46
      %s50 = sphi 0, %s49
      %s66 = sphi 0, %s50
      %s70 = sphi 0, %s70
      %s72 = sphi 0, %s70
      %s73 = sphi 0, %s72
      %s87 = sphi 0, %s73
      %s91 = sphi 0, %s91
      %s93 = sphi 0, %s91
      %s94 = sphi 0, %s93
      %s108 = sphi 0, %s94
      %s112 = sphi 0, %s112
      %s114 = sphi 0, %s112
      %s115 = sphi 0, %s114
      %s129 = sphi 0, %s115
      %s133 = sphi 0, %s133
      %s135 = sphi 0, %s133
      %s136 = sphi 0, %s135
      %s150 = sphi 0, %s136
      %s156 = sphi 0, %s158
      %s159 = sphi 0, %s156
      %s160 = sphi 0, %s159
      %s176 = sphi 0, %s160
      %s182 = sphi 0, %s184
      %s185 = sphi 0, %s182
      %s186 = sphi 0, %s185
      %s202 = sphi 0, %s186
      %s210 = sphi 0, %s212
      %s213 = sphi 0, %s210
      %s214 = sphi 0, %s213
      %s230 = sphi 0, %s214
    $region4: #{mlp_mapper_forward.1} parent=1 // loop_header_branch
      %27 = sbr.rel (%p25) target = $region8
    $region5: #{mlp_mapper_forward.1} parent=1 // loop_body
      %s29 = ssub.s32 %s24, 1
      %s30 = ssub.s32 %s24, 2
      %s37 = sadd.s32 1, %s32
      %p38 = scmp.ge.s32.totalorder %s37, 4
      %s39 = scalar_select %p38, 0, %s37
      %s40 = sadd.s32 1, %s31
      %s41 = scalar_select %p38, %s40, %s31
      %p42 = scmp.ge.s32.totalorder %s41, 2
      %s43 = scalar_select %p42, 0, %s41
      %s44 = ssub.s32 %s31, %s43
      %p45 = scmp.eq.s32.totalorder %s44, 0
      %s47 = sadd.s32 %s46, 1
      %s48 = scalar_select %p45, %s46, %s47
      %p51 = pneg %p45
      %p52 = scmp.eq.s32.totalorder %s24, 7
      %p53 = por %p51, %p52
      %p54 = scmp.ne.s32.totalorder %s46, %s49
      %p55 = scmp.eq.s32.totalorder %s24, 0
      %p56 = por %p54, %p55
      %p57 = scmp.ne.s32.totalorder %s46, %s49
      %p58 = scmp.eq.s32.totalorder %s29, 7
      %p59 = por %p57, %p58
      %p60 = scmp.ne.s32.totalorder %s49, %s50
      %p61 = scmp.eq.s32.totalorder %s29, 0
      %p62 = por %p60, %p61
      %p63 = scmp.ne.s32.totalorder %s49, %s50
      %p64 = scmp.eq.s32.totalorder %s30, 7
      %p65 = por %p63, %p64
      %p67 = scmp.ne.s32.totalorder %s50, %s66
      %p68 = scmp.eq.s32.totalorder %s30, 0
      %p69 = por %p67, %p68
      %s71 = sadd.s32 %s70, 1
      %p74 = scmp.eq.s32.totalorder %s24, 7
      %p75 = scmp.ne.s32.totalorder %s70, %s72
      %p76 = scmp.eq.s32.totalorder %s24, 0
      %p77 = por %p75, %p76
      %p78 = scmp.ne.s32.totalorder %s70, %s72
      %p79 = scmp.eq.s32.totalorder %s29, 7
      %p80 = por %p78, %p79
      %p81 = scmp.ne.s32.totalorder %s72, %s73
      %p82 = scmp.eq.s32.totalorder %s29, 0
      %p83 = por %p81, %p82
      %p84 = scmp.ne.s32.totalorder %s72, %s73
      %p85 = scmp.eq.s32.totalorder %s30, 7
      %p86 = por %p84, %p85
      %p88 = scmp.ne.s32.totalorder %s73, %s87
      %p89 = scmp.eq.s32.totalorder %s30, 0
      %p90 = por %p88, %p89
      %s92 = sadd.s32 %s91, 1
      %p95 = scmp.eq.s32.totalorder %s24, 7
      %p96 = scmp.ne.s32.totalorder %s91, %s93
      %p97 = scmp.eq.s32.totalorder %s24, 0
      %p98 = por %p96, %p97
      %p99 = scmp.ne.s32.totalorder %s91, %s93
      %p100 = scmp.eq.s32.totalorder %s29, 7
      %p101 = por %p99, %p100
      %p102 = scmp.ne.s32.totalorder %s93, %s94
      %p103 = scmp.eq.s32.totalorder %s29, 0
      %p104 = por %p102, %p103
      %p105 = scmp.ne.s32.totalorder %s93, %s94
      %p106 = scmp.eq.s32.totalorder %s30, 7
      %p107 = por %p105, %p106
      %p109 = scmp.ne.s32.totalorder %s94, %s108
      %p110 = scmp.eq.s32.totalorder %s30, 0
      %p111 = por %p109, %p110
      %s113 = sadd.s32 %s112, 1
      %p116 = scmp.eq.s32.totalorder %s24, 7
      %p117 = scmp.ne.s32.totalorder %s112, %s114
      %p118 = scmp.eq.s32.totalorder %s24, 0
      %p119 = por %p117, %p118
      %p120 = scmp.ne.s32.totalorder %s112, %s114
      %p121 = scmp.eq.s32.totalorder %s29, 7
      %p122 = por %p120, %p121
      %p123 = scmp.ne.s32.totalorder %s114, %s115
      %p124 = scmp.eq.s32.totalorder %s29, 0
      %p125 = por %p123, %p124
      %p126 = scmp.ne.s32.totalorder %s114, %s115
      %p127 = scmp.eq.s32.totalorder %s30, 7
      %p128 = por %p126, %p127
      %p130 = scmp.ne.s32.totalorder %s115, %s129
      %p131 = scmp.eq.s32.totalorder %s30, 0
      %p132 = por %p130, %p131
      %s134 = sadd.s32 %s133, 1
      %p137 = scmp.eq.s32.totalorder %s24, 7
      %p138 = scmp.ne.s32.totalorder %s133, %s135
      %p139 = scmp.eq.s32.totalorder %s24, 0
      %p140 = por %p138, %p139
      %p141 = scmp.ne.s32.totalorder %s133, %s135
      %p142 = scmp.eq.s32.totalorder %s29, 7
      %p143 = por %p141, %p142
      %p144 = scmp.ne.s32.totalorder %s135, %s136
      %p145 = scmp.eq.s32.totalorder %s29, 0
      %p146 = por %p144, %p145
      %p147 = scmp.ne.s32.totalorder %s135, %s136
      %p148 = scmp.eq.s32.totalorder %s30, 7
      %p149 = por %p147, %p148
      %p151 = scmp.ne.s32.totalorder %s136, %s150
      %p152 = scmp.eq.s32.totalorder %s30, 0
      %p153 = por %p151, %p152
      %s154 = ssub.s32 %s32, %s39
      %p155 = scmp.eq.s32.totalorder %s154, 0
      %s157 = sadd.s32 %s156, 1
      %s158 = scalar_select %p155, %s156, %s157
      %p161 = pneg %p155
      %p162 = scmp.eq.s32.totalorder %s24, 7
      %p163 = por %p161, %p162
      %p164 = scmp.ne.s32.totalorder %s156, %s159
      %p165 = scmp.eq.s32.totalorder %s24, 0
      %p166 = por %p164, %p165
      %p167 = scmp.ne.s32.totalorder %s156, %s159
      %p168 = scmp.eq.s32.totalorder %s29, 7
      %p169 = por %p167, %p168
      %p170 = scmp.ne.s32.totalorder %s159, %s160
      %p171 = scmp.eq.s32.totalorder %s29, 0
      %p172 = por %p170, %p171
      %p173 = scmp.ne.s32.totalorder %s159, %s160
      %p174 = scmp.eq.s32.totalorder %s30, 7
      %p175 = por %p173, %p174
      %p177 = scmp.ne.s32.totalorder %s160, %s176
      %p178 = scmp.eq.s32.totalorder %s30, 0
      %p179 = por %p177, %p178
      %s180 = ssub.s32 %s32, %s39
      %p181 = scmp.eq.s32.totalorder %s180, 0
      %s183 = sadd.s32 %s182, 1
      %s184 = scalar_select %p181, %s182, %s183
      %p187 = pneg %p181
      %p188 = scmp.eq.s32.totalorder %s24, 7
      %p189 = por %p187, %p188
      %p190 = scmp.ne.s32.totalorder %s182, %s185
      %p191 = scmp.eq.s32.totalorder %s24, 0
      %p192 = por %p190, %p191
      %p193 = scmp.ne.s32.totalorder %s182, %s185
      %p194 = scmp.eq.s32.totalorder %s29, 7
      %p195 = por %p193, %p194
      %p196 = scmp.ne.s32.totalorder %s185, %s186
      %p197 = scmp.eq.s32.totalorder %s29, 0
      %p198 = por %p196, %p197
      %p199 = scmp.ne.s32.totalorder %s185, %s186
      %p200 = scmp.eq.s32.totalorder %s30, 7
      %p201 = por %p199, %p200
      %p203 = scmp.ne.s32.totalorder %s186, %s202
      %p204 = scmp.eq.s32.totalorder %s30, 0
      %p205 = por %p203, %p204
      %s206 = ssub.s32 %s31, %s43
      %s207 = ssub.s32 %s32, %s39
      %s208 = sor.u32 %s206, %s207
      %p209 = scmp.eq.s32.totalorder %s208, 0
      %s211 = sadd.s32 %s210, 1
      %s212 = scalar_select %p209, %s210, %s211
      %p215 = pneg %p209
      %p216 = scmp.eq.s32.totalorder %s24, 7
      %p217 = por %p215, %p216
      %p218 = scmp.ne.s32.totalorder %s210, %s213
      %p219 = scmp.eq.s32.totalorder %s24, 0
      %p220 = por %p218, %p219
      %p221 = scmp.ne.s32.totalorder %s210, %s213
      %p222 = scmp.eq.s32.totalorder %s29, 7
      %p223 = por %p221, %p222
      %p224 = scmp.ne.s32.totalorder %s213, %s214
      %p225 = scmp.eq.s32.totalorder %s29, 0
      %p226 = por %p224, %p225
      %p227 = scmp.ne.s32.totalorder %s213, %s214
      %p228 = scmp.eq.s32.totalorder %s30, 7
      %p229 = por %p227, %p228
      %p231 = scmp.ne.s32.totalorder %s214, %s230
      %p232 = scmp.eq.s32.totalorder %s30, 0
      %p233 = por %p231, %p232
      %p234 = scmp.le.s32.totalorder 1, %s24
      %p235 = scmp.lt.s32.totalorder %s24, 9
      %p236 = pnand %p234, %p235
      %p237 = pneg %p236
      // Predicated region
      $region9: #{mlp_mapper_forward.1} parent=5 // pred_check
        _
      $region10: #{mlp_mapper_forward.1} parent=5 // pred_check_branch
        %239 = sbr.rel (%p236) target = $region12
      $region11: #{mlp_mapper_forward.1} parent=5 // pred_region
        %s240 = ssub.s32 %s24, 1
        // Predicated region
        $region13: #{mlp_mapper_forward.1} parent=11 // pred_check
          %p241 = pneg %p83
        $region14: #{mlp_mapper_forward.1} parent=11 // pred_check_branch
          %243 = sbr.rel (%p241) target = $region16
        $region15: #{mlp_mapper_forward.1} parent=11 // pred_region
          %s245 = ssub.s32 512, 512
          %246 = vsyncadd [#allocation7], %s245
          %s247 = sshll.u32 [#allocation6], 4
          %s248 = int_to_ptr.vmem [resolvable:$true] %s247
          %253 = dma.hbm_to_vmem [thread:$0]  %s1, 512, %s248, [#allocation7], 64, 64, 4
        $region16: #{mlp_mapper_forward.1} parent=11 // pred_fallthru
          _
        // Predicated region
        $region17: #{mlp_mapper_forward.1} parent=11 // pred_check
          %p254 = pneg %p104
        $region18: #{mlp_mapper_forward.1} parent=11 // pred_check_branch
          %256 = sbr.rel (%p254) target = $region20
        $region19: #{mlp_mapper_forward.1} parent=11 // pred_region
          %s258 = ssub.s32 16, 16
          %259 = vsyncadd [#allocation7], %s258
          %s261 = sshll.u32 [#allocation8], 4
          %s262 = int_to_ptr.vmem [resolvable:$true] %s261
          %264 = dma.hbm_to_vmem [thread:$0]  %s2, 16, %s262, [#allocation7]
        $region20: #{mlp_mapper_forward.1} parent=11 // pred_fallthru
          _
        // Predicated region
        $region21: #{mlp_mapper_forward.1} parent=11 // pred_check
          %p265 = pneg %p125
        $region22: #{mlp_mapper_forward.1} parent=11 // pred_check_branch
          %267 = sbr.rel (%p265) target = $region24
        $region23: #{mlp_mapper_forward.1} parent=11 // pred_region
          %s269 = ssub.s32 2048, 2048
          %270 = vsyncadd [#allocation10], %s269
          %s271 = sshll.u32 [#allocation9], 4
          %s272 = int_to_ptr.vmem [resolvable:$true] %s271
          %277 = dma.hbm_to_vmem [thread:$0]  %s3, 2048, %s272, [#allocation10], 128, 128, 8
        $region24: #{mlp_mapper_forward.1} parent=11 // pred_fallthru
          _
        // Predicated region
        $region25: #{mlp_mapper_forward.1} parent=11 // pred_check
          %p278 = pneg %p146
        $region26: #{mlp_mapper_forward.1} parent=11 // pred_check_branch
          %280 = sbr.rel (%p278) target = $region28
        $region27: #{mlp_mapper_forward.1} parent=11 // pred_region
          %s282 = ssub.s32 32, 32
          %283 = vsyncadd [#allocation10], %s282
          %s285 = sshll.u32 [#allocation11], 4
          %s286 = int_to_ptr.vmem [resolvable:$true] %s285
          %288 = dma.hbm_to_vmem [thread:$0]  %s4, 32, %s286, [#allocation10]
        $region28: #{mlp_mapper_forward.1} parent=11 // pred_fallthru
          _
      $region12: #{mlp_mapper_forward.1} parent=5 // pred_fallthru
        _
      %p289 = scmp.lt.s32.totalorder %s24, 8
      // Predicated region
      $region29: #{mlp_mapper_forward.1} parent=5 // pred_check
        %p290 = pneg %p289
      $region30: #{mlp_mapper_forward.1} parent=5 // pred_check_branch
        %292 = sbr.rel (%p290) target = $region32
      $region31: #{mlp_mapper_forward.1} parent=5 // pred_region
        // Predicated region
        $region33: #{mlp_mapper_forward.1} parent=31 // pred_check
          %p293 = pneg %p56
        $region34: #{mlp_mapper_forward.1} parent=31 // pred_check_branch
          %295 = sbr.rel (%p293) target = $region36
        $region35: #{mlp_mapper_forward.1} parent=31 // pred_region
          %s296 = sand.u32 %s46, 1
          %s297 = scalar_lea.sflag [#allocation4], %s296
          %s298 = sand.u32 %s46, 1
          %s299 = smul.addr %s298, 8
          %s300 = scalar_lea.vmem [#allocation3], %s299
          %s301 = smul.u32 2, %s31
          %s303 = ssub.s32 128, 128
          %304 = vsyncadd %s297, %s303
          %s305 = smul.addr %s301, 64
          %s306 = scalar_lea.hbm %s0, %s305
          %s307 = sshll.u32 %s300, 4
          %s308 = int_to_ptr.vmem [resolvable:$true] %s307
          %313 = dma.hbm_to_vmem [thread:$0]  %s306, 128, %s308, %s297, 64, 64, 4
        $region36: #{mlp_mapper_forward.1} parent=31 // pred_fallthru
          _
        // Predicated region
        $region37: #{mlp_mapper_forward.1} parent=31 // pred_check
          %p314 = pneg %p166
        $region38: #{mlp_mapper_forward.1} parent=31 // pred_check_branch
          %316 = sbr.rel (%p314) target = $region40
        $region39: #{mlp_mapper_forward.1} parent=31 // pred_region
          %s317 = sand.u32 %s24, 1
          %s318 = scalar_lea.sflag [#allocation13], %s317
          %s319 = sand.u32 %s156, 1
          %s320 = smul.addr %s319, 256
          %s321 = scalar_lea.vmem [#allocation12], %s320
          %s322 = smul.u32 2, %s32
          %s324 = ssub.s32 4096, 4096
          %325 = vsyncadd %s318, %s324
          %s326 = smul.addr %s322, 64
          %s327 = scalar_lea.hbm %s5, %s326
          %s328 = sshll.u32 %s321, 4
          %s329 = int_to_ptr.vmem [resolvable:$true] %s328
          %334 = dma.hbm_to_vmem [thread:$0]  %s327, 4096, %s329, %s318, 512, 128, 8
        $region40: #{mlp_mapper_forward.1} parent=31 // pred_fallthru
          _
        // Predicated region
        $region41: #{mlp_mapper_forward.1} parent=31 // pred_check
          %p335 = pneg %p192
        $region42: #{mlp_mapper_forward.1} parent=31 // pred_check_branch
          %337 = sbr.rel (%p335) target = $region44
        $region43: #{mlp_mapper_forward.1} parent=31 // pred_region
          %s338 = sand.u32 %s24, 1
          %s339 = scalar_lea.sflag [#allocation13], %s338
          %s340 = sand.u32 %s182, 1
          %s341 = smul.addr %s340, 2
          %s342 = scalar_lea.vmem [#allocation14], %s341
          %s343 = smul.u32 2, %s32
          %s345 = ssub.s32 32, 32
          %346 = vsyncadd %s339, %s345
          %s347 = smul.addr %s343, 16
          %s348 = scalar_lea.hbm %s6, %s347
          %s350 = sshll.u32 %s342, 4
          %s351 = int_to_ptr.vmem [resolvable:$true] %s350
          %353 = dma.hbm_to_vmem [thread:$0]  %s348, 32, %s351, %s339
        $region44: #{mlp_mapper_forward.1} parent=31 // pred_fallthru
          _
      $region32: #{mlp_mapper_forward.1} parent=5 // pred_fallthru
        _
      %p354 = scmp.le.s32.totalorder 1, %s24
      %p355 = scmp.lt.s32.totalorder %s24, 9
      %p356 = pnand %p354, %p355
      %p357 = pneg %p356
      // Predicated region
      $region45: #{mlp_mapper_forward.1} parent=5 // pred_check
        _
      $region46: #{mlp_mapper_forward.1} parent=5 // pred_check_branch
        %359 = sbr.rel (%p356) target = $region48
      $region47: #{mlp_mapper_forward.1} parent=5 // pred_region
        %s360 = ssub.s32 %s24, 1
        %s361 = sand.u32 %s49, 1
        %s362 = scalar_lea.sflag [#allocation4], %s361
        %s363 = sand.u32 %s49, 1
        %s364 = smul.addr %s363, 8
        %s365 = scalar_lea.vmem [#allocation3], %s364
        // Predicated region
        $region49: #{mlp_mapper_forward.1} parent=47 // pred_check
          %p366 = pneg %p62
        $region50: #{mlp_mapper_forward.1} parent=47 // pred_check_branch
          %368 = sbr.rel (%p366) target = $region52
        $region51: #{mlp_mapper_forward.1} parent=47 // pred_region
          %369 = dma.done %s362, 128
        $region52: #{mlp_mapper_forward.1} parent=47 // pred_fallthru
          _
        // Predicated region
        $region53: #{mlp_mapper_forward.1} parent=47 // pred_check
          %p370 = pneg %p83
        $region54: #{mlp_mapper_forward.1} parent=47 // pred_check_branch
          %372 = sbr.rel (%p370) target = $region56
        $region55: #{mlp_mapper_forward.1} parent=47 // pred_region
          %373 = dma.done [#allocation7], 512
        $region56: #{mlp_mapper_forward.1} parent=47 // pred_fallthru
          _
        // Predicated region
        $region57: #{mlp_mapper_forward.1} parent=47 // pred_check
          %p374 = pneg %p104
        $region58: #{mlp_mapper_forward.1} parent=47 // pred_check_branch
          %376 = sbr.rel (%p374) target = $region60
        $region59: #{mlp_mapper_forward.1} parent=47 // pred_region
          %377 = dma.done [#allocation7], 16
        $region60: #{mlp_mapper_forward.1} parent=47 // pred_fallthru
          _
        // Predicated region
        $region61: #{mlp_mapper_forward.1} parent=47 // pred_check
          %p378 = pneg %p125
        $region62: #{mlp_mapper_forward.1} parent=47 // pred_check_branch
          %380 = sbr.rel (%p378) target = $region64
        $region63: #{mlp_mapper_forward.1} parent=47 // pred_region
          %381 = dma.done [#allocation10], 2048
        $region64: #{mlp_mapper_forward.1} parent=47 // pred_fallthru
          _
        // Predicated region
        $region65: #{mlp_mapper_forward.1} parent=47 // pred_check
          %p382 = pneg %p146
        $region66: #{mlp_mapper_forward.1} parent=47 // pred_check_branch
          %384 = sbr.rel (%p382) target = $region68
        $region67: #{mlp_mapper_forward.1} parent=47 // pred_region
          %385 = dma.done [#allocation10], 32
        $region68: #{mlp_mapper_forward.1} parent=47 // pred_fallthru
          _
        %s386 = sand.u32 %s29, 1
        %s387 = scalar_lea.sflag [#allocation13], %s386
        %s388 = sand.u32 %s159, 1
        %s389 = smul.addr %s388, 256
        %s390 = scalar_lea.vmem [#allocation12], %s389
        // Predicated region
        $region69: #{mlp_mapper_forward.1} parent=47 // pred_check
          %p391 = pneg %p172
        $region70: #{mlp_mapper_forward.1} parent=47 // pred_check_branch
          %393 = sbr.rel (%p391) target = $region72
        $region71: #{mlp_mapper_forward.1} parent=47 // pred_region
          %394 = dma.done %s387, 4096
        $region72: #{mlp_mapper_forward.1} parent=47 // pred_fallthru
          _
        %s395 = sand.u32 %s29, 1
        %s396 = scalar_lea.sflag [#allocation13], %s395
        %s397 = sand.u32 %s185, 1
        %s398 = smul.addr %s397, 2
        %s399 = scalar_lea.vmem [#allocation14], %s398
        // Predicated region
        $region73: #{mlp_mapper_forward.1} parent=47 // pred_check
          %p400 = pneg %p198
        $region74: #{mlp_mapper_forward.1} parent=47 // pred_check_branch
          %402 = sbr.rel (%p400) target = $region76
        $region75: #{mlp_mapper_forward.1} parent=47 // pred_region
          %403 = dma.done %s396, 32
        $region76: #{mlp_mapper_forward.1} parent=47 // pred_fallthru
          _
        %s404 = sand.u32 %s49, 1
        %s405 = scalar_lea.sflag [#allocation4], %s404
        %s406 = sand.u32 %s49, 1
        %s407 = smul.addr %s406, 8
        %s408 = scalar_lea.vmem [#allocation3], %s407
        %p409 = pneg %p62
        %p410 = pneg %p59
        %p411 = pneg %p83
        %p412 = pneg %p80
        %p413 = pneg %p104
        %p414 = pneg %p101
        %p415 = pneg %p125
        %p416 = pneg %p122
        %p417 = pneg %p146
        %p418 = pneg %p143
        %s419 = sand.u32 %s29, 1
        %s420 = scalar_lea.sflag [#allocation13], %s419
        %s421 = sand.u32 %s159, 1
        %s422 = smul.addr %s421, 256
        %s423 = scalar_lea.vmem [#allocation12], %s422
        %p424 = pneg %p172
        %p425 = pneg %p169
        %s426 = sand.u32 %s29, 1
        %s427 = scalar_lea.sflag [#allocation13], %s426
        %s428 = sand.u32 %s185, 1
        %s429 = smul.addr %s428, 2
        %s430 = scalar_lea.vmem [#allocation14], %s429
        %p431 = pneg %p198
        %p432 = pneg %p195
        %p433 = pneg %p226
        %p434 = pneg %p223
        %s435 = sand.u32 %s213, 1
        %s436 = scalar_lea.sflag [#allocation5], %s435
        %s437 = sand.u32 %s213, 1
        %s438 = smul.addr %s437, 32
        %s439 = scalar_lea.vmem [#allocation15], %s438
        %s440 = smul.u32 2, %s33
        %s441 = smul.u32 2, %s34
        %s442 = smul.u32 2, %s34
        %s443 = smul.u32 2, %s33
        %s444 = smul.u32 2, %s34
        %p446 = scmp.eq.s32.totalorder %s34, 0
        // Predicated region
        $region77: #{mlp_mapper_forward.1} parent=47 // pred_check
          %p447 = pneg %p446
        $region78: #{mlp_mapper_forward.1} parent=47 // pred_check_branch
          %449 = sbr.rel (%p447) target = $region80
        $region79: #{mlp_mapper_forward.1} parent=47 // pred_region
          %v450 = vld [vmem:[%s365] sm:$0xf]
          %v451 = vld [vmem:[%s365 + $0x4] sm:$0xf]
          %v452 = vld [vmem:[#allocation6] sm:$0xf]
          %v453 = vld [vmem:[#allocation6 + $0x4] sm:$0xf]
          %v454 = vld [vmem:[#allocation6 + $0x8] sm:$0xf]
          %v455 = vld [vmem:[#allocation6 + $0xc] sm:$0xf]
          %v456 = vld [vmem:[#allocation6 + $0x10] sm:$0xf]
          %v457 = vld [vmem:[#allocation6 + $0x14] sm:$0xf]
          %v458 = vld [vmem:[#allocation6 + $0x18] sm:$0xf]
          %v459 = vld [vmem:[#allocation6 + $0x1c] sm:$0xf]
          %v460 = vld [vmem:[#allocation8] sm:$0x1]
          %v462 = vlaneseq
          %v463 = vshrl.u32 %v462, 7
          %v464 = vsub.s32 0, %v463
          %v465 = vrot.slane %v460, %v464
          %v469 = vunpack.c.l.b16 %v450
          %v470 = vunpack.c.l.b16 %v451
          %v471 = vpack.c.b16 %v470, %v469
          %v480 = vunpack.c.l.b16 %v452
          %v481 = vunpack.c.l.b16 %v453
          %v482 = vunpack.c.l.b16 %v454
          %v483 = vunpack.c.l.b16 %v455
          %v484 = vunpack.c.l.b16 %v456
          %v485 = vunpack.c.l.b16 %v457
          %v486 = vunpack.c.l.b16 %v458
          %v487 = vunpack.c.l.b16 %v459
          %v488 = vpack.c.b16 %v481, %v480
          %v489 = vpack.c.b16 %v483, %v482
          %v490 = vpack.c.b16 %v485, %v484
          %v491 = vpack.c.b16 %v487, %v486
          %vm496 = vcmask 523264
          %v498 = vsel %vm496, %v471, 0
          %500 = vmatprep.subr.bf16.mxu0 0
          %501 = vmatpush1.bf16.msra.mxu0 %v488
          %502 = vmatprep.subr.bf16.mxu0 0
          %503 = vmatpush1.bf16.msra.mxu0 %v489
          %504 = vmatprep.subr.bf16.mxu0 0
          %505 = vmatpush1.bf16.msra.mxu0 %v490
          %506 = vmatprep.subr.bf16.mxu0 0
          %507 = vmatpush1.bf16.msra.mxu0 %v491
          %508 = vmatprep.subr.bf16.mxu0 0
          %509 = vmatpush1.bf16.msra.mxu0 0
          %510 = vmatprep.subr.bf16.mxu0 0
          %511 = vmatpush1.bf16.msra.mxu0 0
          %512 = vmatprep.subr.bf16.mxu0 0
          %513 = vmatpush1.bf16.msra.mxu0 0
          %514 = vmatprep.subr.bf16.mxu0 0
          %515 = vmatpush1.bf16.msra.mxu0 0
          %516 = vmatprep.subr.bf16.mxu0 0
          %517 = vmatpush1.bf16.msra.mxu0 0
          %518 = vmatprep.subr.bf16.mxu0 0
          %519 = vmatpush1.bf16.msra.mxu0 0
          %520 = vmatprep.subr.bf16.mxu0 0
          %521 = vmatpush1.bf16.msra.mxu0 0
          %522 = vmatprep.subr.bf16.mxu0 0
          %523 = vmatpush1.bf16.msra.mxu0 0
          %524 = vmatprep.subr.bf16.mxu0 0
          %525 = vmatpush1.bf16.msra.mxu0 0
          %526 = vmatprep.subr.bf16.mxu0 0
          %527 = vmatpush1.bf16.msra.mxu0 0
          %528 = vmatprep.subr.bf16.mxu0 0
          %529 = vmatpush1.bf16.msra.mxu0 0
          %530 = vmatprep.subr.bf16.mxu0 0
          %531 = vmatpush1.bf16.msra.mxu0 0
          %532 = vmatprep.mubr.bf16.mxu0 0
          %533 = vmatmul.mubr.bf16.gmra.mrb[0].mxu0 %v498
          %v534 = vpop.f32.mrb[0].mxu0
          %v535 = vadd.f32 %v465, %v534
          %v536 = vpop.f32.mrb[0].mxu0
          %v537 = vpop.f32.mrb[0].mxu0
          %v538 = vadd.f32 %v465, %v537
          %v539 = vpop.f32.mrb[0].mxu0
          %540 = vdwg.mxu0
          %v541 = vmax.f32 %v535, 0.0
          %v542 = vmax.f32 %v538, 0.0
          %v543 = vpack.c.bf16 %v542, %v541
          %v544 = vld [vmem:[#allocation9] sm:$0xff]
          %v545 = vld [vmem:[#allocation9 + $0x8] sm:$0xff]
          %v546 = vld [vmem:[#allocation9 + $0x10] sm:$0xff]
          %v547 = vld [vmem:[#allocation9 + $0x18] sm:$0xff]
          %v548 = vld [vmem:[#allocation9 + $0x20] sm:$0xff]
          %v549 = vld [vmem:[#allocation9 + $0x28] sm:$0xff]
          %v550 = vld [vmem:[#allocation9 + $0x30] sm:$0xff]
          %v551 = vld [vmem:[#allocation9 + $0x38] sm:$0xff]
          %v552 = vld [vmem:[#allocation9 + $0x40] sm:$0xff]
          %v553 = vld [vmem:[#allocation9 + $0x48] sm:$0xff]
          %v554 = vld [vmem:[#allocation9 + $0x50] sm:$0xff]
          %v555 = vld [vmem:[#allocation9 + $0x58] sm:$0xff]
          %v556 = vld [vmem:[#allocation9 + $0x60] sm:$0xff]
          %v557 = vld [vmem:[#allocation9 + $0x68] sm:$0xff]
          %v558 = vld [vmem:[#allocation9 + $0x70] sm:$0xff]
          %v559 = vld [vmem:[#allocation9 + $0x78] sm:$0xff]
          %v560 = vld [vmem:[#allocation11] sm:$0x3]
          %v562 = vlaneseq
          %v563 = vshrl.u32 %v562, 7
          %v564 = vsub.s32 0, %v563
          %v565 = vrot.slane %v560, %v564
          %v566 = vlaneseq
          %v567 = vshrl.u32 %v566, 7
          %v568 = vsub.s32 1, %v567
          %v569 = vrot.slane %v560, %v568
          %v588 = vunpack.c.l.b16 %v544
          %v589 = vunpack.c.h.b16 %v544
          %v590 = vunpack.c.l.b16 %v545
          %v591 = vunpack.c.h.b16 %v545
          %v592 = vunpack.c.l.b16 %v546
          %v593 = vunpack.c.h.b16 %v546
          %v594 = vunpack.c.l.b16 %v547
          %v595 = vunpack.c.h.b16 %v547
          %v596 = vunpack.c.l.b16 %v548
          %v597 = vunpack.c.h.b16 %v548
          %v598 = vunpack.c.l.b16 %v549
          %v599 = vunpack.c.h.b16 %v549
          %v600 = vunpack.c.l.b16 %v550
          %v601 = vunpack.c.h.b16 %v550
          %v602 = vunpack.c.l.b16 %v551
          %v603 = vunpack.c.h.b16 %v551
          %v604 = vunpack.c.l.b16 %v552
          %v605 = vunpack.c.h.b16 %v552
          %v606 = vunpack.c.l.b16 %v553
          %v607 = vunpack.c.h.b16 %v553
          %v608 = vunpack.c.l.b16 %v554
          %v609 = vunpack.c.h.b16 %v554
          %v610 = vunpack.c.l.b16 %v555
          %v611 = vunpack.c.h.b16 %v555
          %v612 = vunpack.c.l.b16 %v556
          %v613 = vunpack.c.h.b16 %v556
          %v614 = vunpack.c.l.b16 %v557
          %v615 = vunpack.c.h.b16 %v557
          %v616 = vunpack.c.l.b16 %v558
          %v617 = vunpack.c.h.b16 %v558
          %v618 = vunpack.c.l.b16 %v559
          %v619 = vunpack.c.h.b16 %v559
          %v620 = vpack.c.b16 %v590, %v588
          %v621 = vpack.c.b16 %v591, %v589
          %v622 = vpack.c.b16 %v594, %v592
          %v623 = vpack.c.b16 %v595, %v593
          %v624 = vpack.c.b16 %v598, %v596
          %v625 = vpack.c.b16 %v599, %v597
          %v626 = vpack.c.b16 %v602, %v600
          %v627 = vpack.c.b16 %v603, %v601
          %v628 = vpack.c.b16 %v606, %v604
          %v629 = vpack.c.b16 %v607, %v605
          %v630 = vpack.c.b16 %v610, %v608
          %v631 = vpack.c.b16 %v611, %v609
          %v632 = vpack.c.b16 %v614, %v612
          %v633 = vpack.c.b16 %v615, %v613
          %v634 = vpack.c.b16 %v618, %v616
          %v635 = vpack.c.b16 %v619, %v617
          %652 = vmatprep.subr.bf16.mxu0 %v621
          %653 = vmatpush1.bf16.msra.mxu0 %v620
          %654 = vmatprep.subr.bf16.mxu0 %v623
          %655 = vmatpush1.bf16.msra.mxu0 %v622
          %656 = vmatprep.subr.bf16.mxu0 %v625
          %657 = vmatpush1.bf16.msra.mxu0 %v624
          %658 = vmatprep.subr.bf16.mxu0 %v627
          %659 = vmatpush1.bf16.msra.mxu0 %v626
          %660 = vmatprep.subr.bf16.mxu0 %v629
          %661 = vmatpush1.bf16.msra.mxu0 %v628
          %662 = vmatprep.subr.bf16.mxu0 %v631
          %663 = vmatpush1.bf16.msra.mxu0 %v630
          %664 = vmatprep.subr.bf16.mxu0 %v633
          %665 = vmatpush1.bf16.msra.mxu0 %v632
          %666 = vmatprep.subr.bf16.mxu0 %v635
          %667 = vmatpush1.bf16.msra.mxu0 %v634
          %668 = vmatprep.subr.bf16.mxu0 0
          %669 = vmatpush1.bf16.msra.mxu0 0
          %670 = vmatprep.subr.bf16.mxu0 0
          %671 = vmatpush1.bf16.msra.mxu0 0
          %672 = vmatprep.subr.bf16.mxu0 0
          %673 = vmatpush1.bf16.msra.mxu0 0
          %674 = vmatprep.subr.bf16.mxu0 0
          %675 = vmatpush1.bf16.msra.mxu0 0
          %676 = vmatprep.subr.bf16.mxu0 0
          %677 = vmatpush1.bf16.msra.mxu0 0
          %678 = vmatprep.subr.bf16.mxu0 0
          %679 = vmatpush1.bf16.msra.mxu0 0
          %680 = vmatprep.subr.bf16.mxu0 0
          %681 = vmatpush1.bf16.msra.mxu0 0
          %682 = vmatprep.subr.bf16.mxu0 0
          %683 = vmatpush1.bf16.msra.mxu0 0
          %684 = vmatprep.mubr.bf16.mxu0 0
          %685 = vmatmul.mubr.bf16.gmra.mrb[0].mxu0 %v543
          %v686 = vpop.f32.mrb[0].mxu0
          %v687 = vadd.f32 %v565, %v686
          %v688 = vpop.f32.mrb[0].mxu0
          %v689 = vadd.f32 %v569, %v688
          %v690 = vpop.f32.mrb[0].mxu0
          %v691 = vadd.f32 %v565, %v690
          %v692 = vpop.f32.mrb[0].mxu0
          %v693 = vadd.f32 %v569, %v692
          %694 = vdwg.mxu0
          %v695 = vmax.f32 %v687, 0.0
          %v696 = vmax.f32 %v689, 0.0
          %v697 = vmax.f32 %v691, 0.0
          %v698 = vmax.f32 %v693, 0.0
          %v699 = vpack.c.bf16 %v697, %v695
          %v700 = vpack.c.bf16 %v698, %v696
          %701 = vst [vmem:[#allocation2] sm:$0xff] %v699
          %702 = vst [vmem:[#allocation2 + $0x8] sm:$0xff] %v700
        $region80: #{mlp_mapper_forward.1} parent=47 // pred_fallthru
          _
        %v703 = vld [vmem:[#allocation2] sm:$0xff]
        %v704 = vld [vmem:[#allocation2 + $0x8] sm:$0xff]
        %v705 = vld [vmem:[%s390] sm:$0xff]
        %v706 = vld [vmem:[%s390 + $0x8] sm:$0xff]
        %v707 = vld [vmem:[%s390 + $0x10] sm:$0xff]
        %v708 = vld [vmem:[%s390 + $0x18] sm:$0xff]
        %v709 = vld [vmem:[%s390 + $0x20] sm:$0xff]
        %v710 = vld [vmem:[%s390 + $0x28] sm:$0xff]
        %v711 = vld [vmem:[%s390 + $0x30] sm:$0xff]
        %v712 = vld [vmem:[%s390 + $0x38] sm:$0xff]
        %v713 = vld [vmem:[%s390 + $0x40] sm:$0xff]
        %v714 = vld [vmem:[%s390 + $0x48] sm:$0xff]
        %v715 = vld [vmem:[%s390 + $0x50] sm:$0xff]
        %v716 = vld [vmem:[%s390 + $0x58] sm:$0xff]
        %v717 = vld [vmem:[%s390 + $0x60] sm:$0xff]
        %v718 = vld [vmem:[%s390 + $0x68] sm:$0xff]
        %v719 = vld [vmem:[%s390 + $0x70] sm:$0xff]
        %v720 = vld [vmem:[%s390 + $0x78] sm:$0xff]
        %v721 = vld [vmem:[%s390 + $0x80] sm:$0xff]
        %v722 = vld [vmem:[%s390 + $0x88] sm:$0xff]
        %v723 = vld [vmem:[%s390 + $0x90] sm:$0xff]
        %v724 = vld [vmem:[%s390 + $0x98] sm:$0xff]
        %v725 = vld [vmem:[%s390 + $0xa0] sm:$0xff]
        %v726 = vld [vmem:[%s390 + $0xa8] sm:$0xff]
        %v727 = vld [vmem:[%s390 + $0xb0] sm:$0xff]
        %v728 = vld [vmem:[%s390 + $0xb8] sm:$0xff]
        %v729 = vld [vmem:[%s390 + $0xc0] sm:$0xff]
        %v730 = vld [vmem:[%s390 + $0xc8] sm:$0xff]
        %v731 = vld [vmem:[%s390 + $0xd0] sm:$0xff]
        %v732 = vld [vmem:[%s390 + $0xd8] sm:$0xff]
        %v733 = vld [vmem:[%s390 + $0xe0] sm:$0xff]
        %v734 = vld [vmem:[%s390 + $0xe8] sm:$0xff]
        %v735 = vld [vmem:[%s390 + $0xf0] sm:$0xff]
        %v736 = vld [vmem:[%s390 + $0xf8] sm:$0xff]
        %v737 = vld [vmem:[%s399] sm:$0x3]
        %v739 = vlaneseq
        %v740 = vshrl.u32 %v739, 7
        %v741 = vsub.s32 0, %v740
        %v742 = vrot.slane %v737, %v741
        %v743 = vlaneseq
        %v744 = vshrl.u32 %v743, 7
        %v745 = vsub.s32 1, %v744
        %v746 = vrot.slane %v737, %v745
        %v781 = vunpack.c.l.b16 %v705
        %v782 = vunpack.c.h.b16 %v705
        %v783 = vunpack.c.l.b16 %v706
        %v784 = vunpack.c.h.b16 %v706
        %v785 = vunpack.c.l.b16 %v707
        %v786 = vunpack.c.h.b16 %v707
        %v787 = vunpack.c.l.b16 %v708
        %v788 = vunpack.c.h.b16 %v708
        %v789 = vunpack.c.l.b16 %v709
        %v790 = vunpack.c.h.b16 %v709
        %v791 = vunpack.c.l.b16 %v710
        %v792 = vunpack.c.h.b16 %v710
        %v793 = vunpack.c.l.b16 %v711
        %v794 = vunpack.c.h.b16 %v711
        %v795 = vunpack.c.l.b16 %v712
        %v796 = vunpack.c.h.b16 %v712
        %v797 = vunpack.c.l.b16 %v713
        %v798 = vunpack.c.h.b16 %v713
        %v799 = vunpack.c.l.b16 %v714
        %v800 = vunpack.c.h.b16 %v714
        %v801 = vunpack.c.l.b16 %v715
        %v802 = vunpack.c.h.b16 %v715
        %v803 = vunpack.c.l.b16 %v716
        %v804 = vunpack.c.h.b16 %v716
        %v805 = vunpack.c.l.b16 %v717
        %v806 = vunpack.c.h.b16 %v717
        %v807 = vunpack.c.l.b16 %v718
        %v808 = vunpack.c.h.b16 %v718
        %v809 = vunpack.c.l.b16 %v719
        %v810 = vunpack.c.h.b16 %v719
        %v811 = vunpack.c.l.b16 %v720
        %v812 = vunpack.c.h.b16 %v720
        %v813 = vunpack.c.l.b16 %v721
        %v814 = vunpack.c.h.b16 %v721
        %v815 = vunpack.c.l.b16 %v722
        %v816 = vunpack.c.h.b16 %v722
        %v817 = vunpack.c.l.b16 %v723
        %v818 = vunpack.c.h.b16 %v723
        %v819 = vunpack.c.l.b16 %v724
        %v820 = vunpack.c.h.b16 %v724
        %v821 = vunpack.c.l.b16 %v725
        %v822 = vunpack.c.h.b16 %v725
        %v823 = vunpack.c.l.b16 %v726
        %v824 = vunpack.c.h.b16 %v726
        %v825 = vunpack.c.l.b16 %v727
        %v826 = vunpack.c.h.b16 %v727
        %v827 = vunpack.c.l.b16 %v728
        %v828 = vunpack.c.h.b16 %v728
        %v829 = vunpack.c.l.b16 %v729
        %v830 = vunpack.c.h.b16 %v729
        %v831 = vunpack.c.l.b16 %v730
        %v832 = vunpack.c.h.b16 %v730
        %v833 = vunpack.c.l.b16 %v731
        %v834 = vunpack.c.h.b16 %v731
        %v835 = vunpack.c.l.b16 %v732
        %v836 = vunpack.c.h.b16 %v732
        %v837 = vunpack.c.l.b16 %v733
        %v838 = vunpack.c.h.b16 %v733
        %v839 = vunpack.c.l.b16 %v734
        %v840 = vunpack.c.h.b16 %v734
        %v841 = vunpack.c.l.b16 %v735
        %v842 = vunpack.c.h.b16 %v735
        %v843 = vunpack.c.l.b16 %v736
        %v844 = vunpack.c.h.b16 %v736
        %v845 = vpack.c.b16 %v783, %v781
        %v846 = vpack.c.b16 %v784, %v782
        %v847 = vpack.c.b16 %v787, %v785
        %v848 = vpack.c.b16 %v788, %v786
        %v849 = vpack.c.b16 %v791, %v789
        %v850 = vpack.c.b16 %v792, %v790
        %v851 = vpack.c.b16 %v795, %v793
        %v852 = vpack.c.b16 %v796, %v794
        %v853 = vpack.c.b16 %v799, %v797
        %v854 = vpack.c.b16 %v800, %v798
        %v855 = vpack.c.b16 %v803, %v801
        %v856 = vpack.c.b16 %v804, %v802
        %v857 = vpack.c.b16 %v807, %v805
        %v858 = vpack.c.b16 %v808, %v806
        %v859 = vpack.c.b16 %v811, %v809
        %v860 = vpack.c.b16 %v812, %v810
        %v861 = vpack.c.b16 %v815, %v813
        %v862 = vpack.c.b16 %v816, %v814
        %v863 = vpack.c.b16 %v819, %v817
        %v864 = vpack.c.b16 %v820, %v818
        %v865 = vpack.c.b16 %v823, %v821
        %v866 = vpack.c.b16 %v824, %v822
        %v867 = vpack.c.b16 %v827, %v825
        %v868 = vpack.c.b16 %v828, %v826
        %v869 = vpack.c.b16 %v831, %v829
        %v870 = vpack.c.b16 %v832, %v830
        %v871 = vpack.c.b16 %v835, %v833
        %v872 = vpack.c.b16 %v836, %v834
        %v873 = vpack.c.b16 %v839, %v837
        %v874 = vpack.c.b16 %v840, %v838
        %v875 = vpack.c.b16 %v843, %v841
        %v876 = vpack.c.b16 %v844, %v842
        %909 = vmatprep.subr.bf16.mxu0 %v846
        %910 = vmatpush1.bf16.msra.mxu0 %v845
        %911 = vmatprep.subr.bf16.mxu0 %v848
        %912 = vmatpush1.bf16.msra.mxu0 %v847
        %913 = vmatprep.subr.bf16.mxu0 %v850
        %914 = vmatpush1.bf16.msra.mxu0 %v849
        %915 = vmatprep.subr.bf16.mxu0 %v852
        %916 = vmatpush1.bf16.msra.mxu0 %v851
        %917 = vmatprep.subr.bf16.mxu0 %v854
        %918 = vmatpush1.bf16.msra.mxu0 %v853
        %919 = vmatprep.subr.bf16.mxu0 %v856
        %920 = vmatpush1.bf16.msra.mxu0 %v855
        %921 = vmatprep.subr.bf16.mxu0 %v858
        %922 = vmatpush1.bf16.msra.mxu0 %v857
        %923 = vmatprep.subr.bf16.mxu0 %v860
        %924 = vmatpush1.bf16.msra.mxu0 %v859
        %925 = vmatprep.subr.bf16.mxu0 %v862
        %926 = vmatpush1.bf16.msra.mxu0 %v861
        %927 = vmatprep.subr.bf16.mxu0 %v864
        %928 = vmatpush1.bf16.msra.mxu0 %v863
        %929 = vmatprep.subr.bf16.mxu0 %v866
        %930 = vmatpush1.bf16.msra.mxu0 %v865
        %931 = vmatprep.subr.bf16.mxu0 %v868
        %932 = vmatpush1.bf16.msra.mxu0 %v867
        %933 = vmatprep.subr.bf16.mxu0 %v870
        %934 = vmatpush1.bf16.msra.mxu0 %v869
        %935 = vmatprep.subr.bf16.mxu0 %v872
        %936 = vmatpush1.bf16.msra.mxu0 %v871
        %937 = vmatprep.subr.bf16.mxu0 %v874
        %938 = vmatpush1.bf16.msra.mxu0 %v873
        %939 = vmatprep.subr.bf16.mxu0 %v876
        %940 = vmatpush1.bf16.msra.mxu0 %v875
        %941 = vmatprep.mubr.bf16.mxu0 %v704
        %942 = vmatmul.mubr.bf16.gmra.mrb[0].mxu0 %v703
        %v943 = vpop.f32.mrb[0].mxu0
        %v944 = vadd.f32 %v742, %v943
        %v945 = vpop.f32.mrb[0].mxu0
        %v946 = vadd.f32 %v746, %v945
        %v947 = vpop.f32.mrb[0].mxu0
        %v948 = vadd.f32 %v742, %v947
        %v949 = vpop.f32.mrb[0].mxu0
        %v950 = vadd.f32 %v746, %v949
        %951 = vdwg.mxu0
        %952 = vst [vmem:[%s439] sm:$0xff] %v944
        %953 = vst [vmem:[%s439 + $0x8] sm:$0xff] %v946
        %954 = vst [vmem:[%s439 + $0x10] sm:$0xff] %v948
        %955 = vst [vmem:[%s439 + $0x18] sm:$0xff] %v950
        %s956 = sand.u32 %s213, 1
        %s957 = scalar_lea.sflag [#allocation5], %s956
        %s958 = sand.u32 %s213, 1
        %s959 = smul.addr %s958, 32
        %s960 = scalar_lea.vmem [#allocation15], %s959
        // Predicated region
        $region81: #{mlp_mapper_forward.1} parent=47 // pred_check
          %p961 = pneg %p223
        $region82: #{mlp_mapper_forward.1} parent=47 // pred_check_branch
          %963 = sbr.rel (%p961) target = $region84
        $region83: #{mlp_mapper_forward.1} parent=47 // pred_region
          %s964 = smul.u32 2, %s33
          %s965 = smul.u32 2, %s34
          %s967 = ssub.s32 512, 512
          %968 = vsyncadd %s957, %s967
          %s969 = smul.addr %s964, 8
          %s970 = sadd.s32 %s965, %s969
          %s971 = smul.addr %s970, 128
          %s972 = scalar_lea.hbm %s7, %s971
          %s973 = sshll.u32 %s960, 4
          %s974 = int_to_ptr.vmem [resolvable:$true] %s973
          %979 = dma.vmem_to_hbm [thread:$0]  %s974, 512, %s972, %s957, 256, 1024, 16
        $region84: #{mlp_mapper_forward.1} parent=47 // pred_fallthru
          _
      $region48: #{mlp_mapper_forward.1} parent=5 // pred_fallthru
        _
      %p980 = scmp.le.s32.totalorder 2, %s24
      // Predicated region
      $region85: #{mlp_mapper_forward.1} parent=5 // pred_check
        %p981 = pneg %p980
      $region86: #{mlp_mapper_forward.1} parent=5 // pred_check_branch
        %983 = sbr.rel (%p981) target = $region88
      $region87: #{mlp_mapper_forward.1} parent=5 // pred_region
        %s984 = ssub.s32 %s24, 2
        // Predicated region
        $region89: #{mlp_mapper_forward.1} parent=87 // pred_check
          %p985 = pneg %p229
        $region90: #{mlp_mapper_forward.1} parent=87 // pred_check_branch
          %987 = sbr.rel (%p985) target = $region92
        $region91: #{mlp_mapper_forward.1} parent=87 // pred_region
          %s988 = sand.u32 %s214, 1
          %s989 = scalar_lea.sflag [#allocation5], %s988
          %s990 = sand.u32 %s214, 1
          %s991 = smul.addr %s990, 32
          %s992 = scalar_lea.vmem [#allocation15], %s991
          %993 = dma.done %s989, 512
        $region92: #{mlp_mapper_forward.1} parent=87 // pred_fallthru
          _
      $region88: #{mlp_mapper_forward.1} parent=5 // pred_fallthru
        _
    $region6: #{mlp_mapper_forward.1} parent=1 // loop_footer
      %s28 = sadd.s32 1, %s24
    $region7: #{mlp_mapper_forward.1} parent=1 // loop_footer_branch
      %23 = sbr.rel target = $region3
    $region8: #{mlp_mapper_forward.1} parent=1 // loop_exit
      _
    %994 = vsyncpa [#allocation4], 1
    %s995 = scalar_lea.sflag [#allocation4], 1
    %996 = vsyncpa %s995, 1
    %997 = vsyncpa [#allocation7], 1
    %998 = vsyncpa [#allocation10], 1
    %999 = vsyncpa [#allocation13], 1
    %s1000 = scalar_lea.sflag [#allocation13], 1
    %1001 = vsyncpa %s1000, 1
    %1002 = vsyncpa [#allocation5], 1
    %s1003 = scalar_lea.sflag [#allocation5], 1
    %1004 = vsyncpa %s1003, 1

</llo_original>
